<compile_context>
chip_gen: v7x
topology: tpu7x:2x2x1
jax: 0.10.0
libtpu: 0.0.40
codegen_flags: <defaults>
</compile_context>

<pallas_src>
import functools
import math

import jax
import jax.numpy as jnp
from jax.experimental import pallas as pl
from jax.experimental.pallas import tpu as pltpu


def _round_up(n, mult):
    return ((n + mult - 1) // mult) * mult


def _vmem_budget_bytes():
    """Generation-aware VMEM budget: ~75% of physical VMEM, capped at 100 MiB.

    => ~48 MiB on v7x (64 MiB physical), ~96 MiB on v5e/v6e (128 MiB physical).
    """
    phys = 64 << 20
    try:
        info = pltpu.get_tpu_info()
        phys = int(getattr(info, "vmem_capacity_bytes", phys))
    except Exception:
        pass  # interpret mode / old runtime: keep the conservative 64 MiB.
    return min((phys * 3) // 4, 100 << 20)


def _select_tiles(B, C, Dp, *, mm_itemsize, out_itemsize, budget):
    """Pick (tb, tc) under the VMEM budget.

    Collapse the batch axis (tb == padded B) whenever it fits, so both x and W
    are read from HBM exactly once; otherwise halve tb / shrink tc.
    """
    tb = min(_round_up(max(B, 1), 8), 1024)
    tc = min(_round_up(max(C, 1), 128), 4096)

    def vmem_bytes(tb_, tc_):
        return (2 * tb_ * Dp * mm_itemsize        # xn tile   (double-buffered)
                + 2 * Dp * tc_ * mm_itemsize      # W^T tile  (double-buffered)
                + 2 * tb_ * tc_ * out_itemsize    # out tile  (double-buffered)
                + 2 * tb_ * 128 * 4)              # label tile (lane-padded)

    while tc > 128 and vmem_bytes(tb, tc) > budget:
        tc -= 128
    while tb > 8 and vmem_bytes(tb, tc) > budget:
        tb = _round_up(max(tb // 2, 8), 8)
    return tb, tc


def _prep_weight(weight, Dp, Cp, matmul_dtype):
    """One fused pass over W: L2-normalize rows -> cast -> transpose -> pad.

    F.normalize(v) == v * rsqrt(max(||v||^2, 1e-24)).  Result is (Dp, Cp) with
    the padded region exactly zero.  For frozen / inference weights this can
    be computed once and cached outside the per-call path.
    """
    C, D = weight.shape
    w_inv = jax.lax.rsqrt(
        jnp.maximum(jnp.sum(weight * weight, axis=1, keepdims=True), 1e-24))
    wnt = (weight * w_inv).astype(matmul_dtype).T          # (D, C)
    return jnp.pad(wnt, ((0, Dp - D), (0, Cp - C)))


def _prep_input(x, Bp, Dp, matmul_dtype):
    """One fused pass over x: L2-normalize rows -> cast -> pad (rows -> zeros)."""
    B, D = x.shape
    x_inv = jax.lax.rsqrt(
        jnp.maximum(jnp.sum(x * x, axis=1, keepdims=True), 1e-24))
    xn = (x * x_inv).astype(matmul_dtype)                  # (B, D)
    return jnp.pad(xn, ((0, Bp - B), (0, Dp - D)))


def _arcmargin_kernel(xn_ref, wnt_ref, lab_ref, o_ref, *,
                      s, cos_m, sin_m, th, mm, eps):
    # xn_ref : (tb, Dp)  matmul_dtype -- pre-L2-normalized, zero-padded inputs
    # wnt_ref: (Dp, tc)  matmul_dtype -- pre-L2-normalized W^T class tile
    # lab_ref: (tb, 1)   int32        -- labels (-1 for padded batch rows)
    # o_ref  : (tb, tc)  out dtype
    #
    # cos(theta): (tb, Dp) @ (Dp, tc) on the MXU with f32 accumulation.
    cos_t = jnp.dot(xn_ref[...], wnt_ref[...], preferred_element_type=jnp.float32)
    cos_t = jnp.clip(cos_t, -1.0 + eps, 1.0 - eps)

    sin_t = jnp.sqrt(1.0 - cos_t * cos_t)
    cos_phi = cos_t * cos_m - sin_t * sin_m
    cos_phi = jnp.where(cos_t > th, cos_phi, cos_t - mm)

    # one-hot(label) for this class tile: local column == label - tile_offset.
    # (Subtracting from the (tb,1) label is ~1 vreg op vs ~tb*tc/1024 adds.)
    tc = o_ref.shape[1]
    local_lab = lab_ref[...] - pl.program_id(0) * tc           # (tb, 1)
    col = jax.lax.broadcasted_iota(jnp.int32, cos_t.shape, 1)  # (tb, tc)
    one_hot = col == local_lab

    o_ref[...] = (jnp.where(one_hot, cos_phi, cos_t) * s).astype(o_ref.dtype)


def arc_margin_product(x, weight, label, *, s=64.0, m=0.5,
                       matmul_dtype=jnp.bfloat16, out_dtype=jnp.float32,
                       tb=None, tc=None):
    """Pallas TPU forward of ArcMarginProduct.

    x:      (B, in_features) float32
    weight: (out_features, in_features) float32
    label:  (B,) int
    """
    B, D = x.shape
    C, D2 = weight.shape
    assert D == D2, "feature dims of x and weight must match"

    Dp = _round_up(D, 128)
    budget = _vmem_budget_bytes()
    auto_tb, auto_tc = _select_tiles(
        B, C, Dp,
        mm_itemsize=jnp.dtype(matmul_dtype).itemsize,
        out_itemsize=jnp.dtype(out_dtype).itemsize,
        budget=budget)
    tb = auto_tb if tb is None else _round_up(min(tb, _round_up(B, 8)), 8)
    tc = auto_tc if tc is None else _round_up(min(tc, _round_up(C, 128)), 128)

    Bp = _round_up(B, tb)
    Cp = _round_up(C, tc)
    nc, nb = Cp // tc, Bp // tb

    # Fused, once-per-call operand prep (cacheable for frozen weights).
    xn_p = _prep_input(x, Bp, Dp, matmul_dtype)          # (Bp, Dp)
    wnt_p = _prep_weight(weight, Dp, Cp, matmul_dtype)   # (Dp, Cp)
    lab = label.reshape(-1, 1).astype(jnp.int32)
    lab_p = jnp.pad(lab, ((0, Bp - B), (0, 0)), constant_values=-1)

    kernel = functools.partial(
        _arcmargin_kernel,
        s=float(s),
        cos_m=math.cos(m),
        sin_m=math.sin(m),
        th=math.cos(math.pi - m),
        mm=math.sin(math.pi - m) * m,
        eps=1e-07,
    )

    # Class tiles OUTER (slow), batch tiles INNER (fast): the W^T tile's block
    # index is invariant along the inner axis, so each weight tile is DMA'd
    # exactly once; with nb == 1 (collapsed batch) x is also read only once.
    grid = (nc, nb)

    out = pl.pallas_call(
        kernel,
        out_shape=jax.ShapeDtypeStruct((Bp, Cp), out_dtype),
        grid=grid,
        in_specs=[
            pl.BlockSpec((tb, Dp), lambda c, b: (b, 0)),   # xn   (varies inner)
            pl.BlockSpec((Dp, tc), lambda c, b: (0, c)),   # W^T  (resident/streamed once)
            pl.BlockSpec((tb, 1), lambda c, b: (b, 0)),    # labels
        ],
        out_specs=pl.BlockSpec((tb, tc), lambda c, b: (b, c)),
        compiler_params=pltpu.CompilerParams(
            dimension_semantics=("parallel", "parallel"),
            vmem_limit_bytes=int(budget)),
    )(xn_p, wnt_p, lab_p)

    if Bp == B and Cp == C:
        return out
    return out[:B, :C]


def _reference(x, weight, label, *, s=64.0, m=0.5):
    """Pure-JAX f32 reference matching the PyTorch module."""
    eps = 1e-07
    cos_m, sin_m = math.cos(m), math.sin(m)
    th = math.cos(math.pi - m)
    mm = math.sin(math.pi - m) * m
    xn = x / jnp.maximum(jnp.linalg.norm(x, axis=-1, keepdims=True), 1e-12)
    wn = weight / jnp.maximum(
        jnp.linalg.norm(weight, axis=-1, keepdims=True), 1e-12)
    cos_t = jax.lax.dot_general(
        xn, wn, (((1,), (1,)), ((), ())),
        preferred_element_type=jnp.float32,
        precision=jax.lax.Precision.HIGHEST)
    cos_t = jnp.clip(cos_t, -1.0 + eps, 1.0 - eps)
    sin_t = jnp.sqrt(1.0 - cos_t ** 2)
    cos_phi = cos_t * cos_m - sin_t * sin_m
    cos_phi = jnp.where(cos_t > th, cos_phi, cos_t - mm)
    one_hot = jax.nn.one_hot(label, weight.shape[0], dtype=cos_t.dtype)
    return jnp.where(one_hot == 1, cos_phi, cos_t) * s


if __name__ == "__main__":
    key = jax.random.PRNGKey(0)
    kx, kw, kl, k2x, k2w, k2l = jax.random.split(key, 6)

    # --- Case 1: small shapes consistent with the module (single tile). ---
    B, in_features, out_features = 8, 32, 16
    x = jax.random.normal(kx, (B, in_features), dtype=jnp.float32)
    bound = math.sqrt(6.0 / (in_features + out_features))   # xavier_uniform_
    weight = jax.random.uniform(
        kw, (out_features, in_features), minval=-bound, maxval=bound,
        dtype=jnp.float32)
    label = jax.random.randint(kl, (B,), 0, out_features, dtype=jnp.int32)

    ref = _reference(x, weight, label, s=64.0, m=0.5)

    # Default fast path: bf16 operands on the MXU (f32 accumulation).
    out = jax.block_until_ready(
        arc_margin_product(x, weight, label, s=64.0, m=0.5))
    assert out.shape == (B, out_features)
    assert jnp.allclose(out, ref, atol=0.6, rtol=2e-2), \
        "bf16-matmul path mismatch vs f32 reference"

    # f32 matmul path: tight check against the f32 reference.
    out_f32 = jax.block_until_ready(
        arc_margin_product(x, weight, label, s=64.0, m=0.5,
                           matmul_dtype=jnp.float32))
    assert jnp.allclose(out_f32, ref, atol=2e-2, rtol=2e-2), \
        "f32-matmul path mismatch vs f32 reference"

    # --- Case 2: forced small tiles -> multi-tile (class-outer, batch-inner)
    #     grid, exercising W^T streaming and the per-tile one-hot offset. ---
    B2, D2, C2 = 24, 40, 300
    x2 = jax.random.normal(k2x, (B2, D2), dtype=jnp.float32)
    bound2 = math.sqrt(6.0 / (D2 + C2))
    w2 = jax.random.uniform(k2w, (C2, D2), minval=-bound2, maxval=bound2,
                            dtype=jnp.float32)
    l2 = jax.random.randint(k2l, (B2,), 0, C2, dtype=jnp.int32)

    ref2 = _reference(x2, w2, l2, s=64.0, m=0.5)
    out2 = jax.block_until_ready(
        arc_margin_product(x2, w2, l2, s=64.0, m=0.5, tb=8, tc=128))
    assert out2.shape == (B2, C2)
    assert jnp.allclose(out2, ref2, atol=0.6, rtol=2e-2), \
        "multi-tile bf16 path mismatch vs f32 reference"

    print("KERNEL_OK")
</pallas_src>

<mosaic_0001>
module attributes {stable_mosaic.version = 11 : i64} {
  func.func @_arcmargin_kernel(%arg0: i32, %arg1: i32, %arg2: memref<8x128xbf16, #tpu.memory_space<vmem>>, %arg3: memref<128x128xbf16, #tpu.memory_space<vmem>>, %arg4: memref<8x1xi32, #tpu.memory_space<vmem>>, %arg5: memref<8x128xf32, #tpu.memory_space<vmem>>) attributes {dimension_semantics = [#tpu.dimension_semantics<parallel>, #tpu.dimension_semantics<parallel>], iteration_bounds = array<i64: 1, 1>, scalar_prefetch = 0 : i64, scratch_operands = 0 : i64, tpu.core_type = #tpu.core_type<tc>, window_params = [{transform_indices = @transform_0, window_bounds = array<i64: 8, 128>}, {transform_indices = @transform_1, window_bounds = array<i64: 128, 128>}, {transform_indices = @transform_2, window_bounds = array<i64: 8, 1>}, {transform_indices = @transform_3, window_bounds = array<i64: 8, 128>}]} {
    %c0 = arith.constant 0 : index
    %c0_0 = arith.constant 0 : index
    %0 = vector.load %arg2[%c0, %c0_0] : memref<8x128xbf16, #tpu.memory_space<vmem>>, vector<8x128xbf16>
    %c0_1 = arith.constant 0 : index
    %c0_2 = arith.constant 0 : index
    %1 = vector.load %arg3[%c0_1, %c0_2] : memref<128x128xbf16, #tpu.memory_space<vmem>>, vector<128x128xbf16>
    %cst = arith.constant dense<0.000000e+00> : vector<8x128xf32>
    %2 = tpu.matmul %0, %1, %cst {dimension_numbers = #tpu.dot_dimension_numbers<[1], [0], [0], [1], [0, 0, 1, 1], [], []>} : vector<8x128xbf16>, vector<128x128xbf16>, vector<8x128xf32> -> vector<8x128xf32>
    %cst_3 = arith.constant -0.99999988 : f32
    %cst_4 = arith.constant 0.99999988 : f32
    %3 = vector.broadcast %cst_3 : f32 to vector<8x128xf32>
    %4 = arith.maximumf %3, %2 : vector<8x128xf32>
    %5 = vector.broadcast %cst_4 : f32 to vector<8x128xf32>
    %6 = arith.minimumf %5, %4 : vector<8x128xf32>
    %7 = arith.mulf %6, %6 : vector<8x128xf32>
    %cst_5 = arith.constant 1.000000e+00 : f32
    %8 = vector.broadcast %cst_5 : f32 to vector<8x128xf32>
    %9 = arith.subf %8, %7 : vector<8x128xf32>
    %10 = math.sqrt %9 : vector<8x128xf32>
    %cst_6 = arith.constant 0.87758255 : f32
    %11 = vector.broadcast %cst_6 : f32 to vector<8x128xf32>
    %12 = arith.mulf %6, %11 : vector<8x128xf32>
    %cst_7 = arith.constant 0.47942555 : f32
    %13 = vector.broadcast %cst_7 : f32 to vector<8x128xf32>
    %14 = arith.mulf %10, %13 : vector<8x128xf32>
    %15 = arith.subf %12, %14 : vector<8x128xf32>
    %cst_8 = arith.constant -0.87758255 : f32
    %16 = vector.broadcast %cst_8 : f32 to vector<8x128xf32>
    %17 = arith.cmpf ogt, %6, %16 : vector<8x128xf32>
    %cst_9 = arith.constant 0.239712775 : f32
    %18 = vector.broadcast %cst_9 : f32 to vector<8x128xf32>
    %19 = arith.subf %6, %18 : vector<8x128xf32>
    %20 = arith.select %17, %15, %19 : vector<8x128xi1>, vector<8x128xf32>
    %c0_10 = arith.constant 0 : index
    %c0_11 = arith.constant 0 : index
    %21 = vector.load %arg4[%c0_10, %c0_11] : memref<8x1xi32, #tpu.memory_space<vmem>>, vector<8x1xi32>
    %c128_i32 = arith.constant 128 : i32
    %22 = arith.muli %arg0, %c128_i32 : i32
    %23 = vector.broadcast %22 : i32 to vector<8x1xi32>
    %24 = arith.subi %21, %23 : vector<8x1xi32>
    %25 = tpu.iota {dimensions = array<i32: 1>} : vector<8x128xi32>
    %26 = vector.broadcast %24 : vector<8x1xi32> to vector<8x128xi32>
    %27 = arith.cmpi eq, %25, %26 : vector<8x128xi32>
    %28 = arith.select %27, %20, %6 : vector<8x128xi1>, vector<8x128xf32>
    %cst_12 = arith.constant 6.400000e+01 : f32
    %29 = vector.broadcast %cst_12 : f32 to vector<8x128xf32>
    %30 = arith.mulf %28, %29 : vector<8x128xf32>
    %c0_13 = arith.constant 0 : index
    %c0_14 = arith.constant 0 : index
    %31 = vector.load %arg5[%c0_13, %c0_14] : memref<8x128xf32, #tpu.memory_space<vmem>>, vector<8x128xf32>
    tpu.vector_store %arg5[%c0_13, %c0_14], %30 {strides = array<i32>} : memref<8x128xf32, #tpu.memory_space<vmem>>, vector<8x128xf32>,
    return
  }
  func.func @transform_0(%arg0: i32, %arg1: i32) -> (i32, i32) {
    %c0_i32 = arith.constant 0 : i32
    %c0_i32_0 = arith.constant 0 : i32
    return %arg1, %c0_i32 : i32, i32
  }
  func.func @transform_1(%arg0: i32, %arg1: i32) -> (i32, i32) {
    %c0_i32 = arith.constant 0 : i32
    %c0_i32_0 = arith.constant 0 : i32
    return %c0_i32, %arg0 : i32, i32
  }
  func.func @transform_2(%arg0: i32, %arg1: i32) -> (i32, i32) {
    %c0_i32 = arith.constant 0 : i32
    %c0_i32_0 = arith.constant 0 : i32
    return %arg1, %c0_i32 : i32, i32
  }
  func.func @transform_3(%arg0: i32, %arg1: i32) -> (i32, i32) {
    %c0_i32 = arith.constant 0 : i32
    return %arg1, %arg0 : i32, i32
  }
}

</mosaic_0001>

<llo_original>
// kernel: tpu_custom_call.1
$region0: #{tpu_custom_call.1}
  #allocation0 [shape = 'u32[]', space=smem, size = 0x4, offset = 0x4, fixed_abs, tag = 'smem constant byte address 0x4 - core index']
  #allocation1 [shape = 'u32[144,128]{1,0:T(1,128)}', space=vmem, size = 0x12000, scoped, tag = 'internal scratch']
  %s0 = inlined_call_operand.vmem [shape: bf16[8,128], index: 0, kind: input, shape index: {}]
  %s1 = inlined_call_operand.hbm [shape: bf16[128,128], index: 1, kind: input, shape index: {}]
  %s2 = inlined_call_operand.vmem [shape: s32[8,1], index: 2, kind: input, shape index: {}]
  %s3 = inlined_call_operand.hbm [shape: f32[8,128], index: 3, kind: output, shape index: {}]
  %s4 = sld [smem:[#allocation0]]
  $region26: #{tpu_custom_call.1} parent=0
    _
  %s6 = ssub.s32 1, %s4
  %s7 = scalar_select 0, %s6, %s4
  $region1: #{tpu_custom_call.1} parent=0
    #allocation2 [shape = 'u8[32768]{0}', space=vmem, size = 0x8000, scoped, tag = 'input window, operand 1, single buffered']
    #allocation3 [shape = 's32[1]{0}', space=sflag, size = 0x4, scoped, tag = 'scoped memory for tpu_custom_call.1']
    #allocation4 [shape = 's32[1]{0}', space=sflag, size = 0x4, scoped, tag = 'scoped memory for tpu_custom_call.1']
    #allocation5 [shape = 'u8[4096]{0}', space=vmem, size = 0x1000, scoped, tag = 'output window, operand 0, single buffered']
    %8 = vsyncpa [#allocation3], 0
    %9 = vsyncpa [#allocation4], 0
    // Predicated region
    $region2: #{tpu_custom_call.1} parent=1 // pred_check
      _
    $region3: #{tpu_custom_call.1} parent=1 // pred_check_branch
      %11 = sbr.rel (0) target = $region5
    $region4: #{tpu_custom_call.1} parent=1 // pred_region
      _
    $region5: #{tpu_custom_call.1} parent=1 // pred_fallthru
      _
    // Predicated region
    $region6: #{tpu_custom_call.1} parent=1 // pred_check
      _
    $region7: #{tpu_custom_call.1} parent=1 // pred_check_branch
      %13 = sbr.rel (0) target = $region9
    $region8: #{tpu_custom_call.1} parent=1 // pred_region
      %s15 = ssub.s32 1024, 1024
      %16 = vsyncadd [#allocation3], %s15
      %s17 = sshll.u32 [#allocation2], 4
      %s18 = int_to_ptr.vmem [resolvable:$true] %s17
      %23 = dma.hbm_to_vmem [thread:$0]  %s1, 1024, %s18, [#allocation3], 64, 64, 4
    $region9: #{tpu_custom_call.1} parent=1 // pred_fallthru
      _
    // Predicated region
    $region10: #{tpu_custom_call.1} parent=1 // pred_check
      _
    $region11: #{tpu_custom_call.1} parent=1 // pred_check_branch
      %25 = sbr.rel (0) target = $region13
    $region12: #{tpu_custom_call.1} parent=1 // pred_region
      _
    $region13: #{tpu_custom_call.1} parent=1 // pred_fallthru
      _
    // Predicated region
    $region14: #{tpu_custom_call.1} parent=1 // pred_check
      _
    $region15: #{tpu_custom_call.1} parent=1 // pred_check_branch
      %27 = sbr.rel (0) target = $region17
    $region16: #{tpu_custom_call.1} parent=1 // pred_region
      %28 = dma.done [#allocation3], 1024
    $region17: #{tpu_custom_call.1} parent=1 // pred_fallthru
      _
    %v30 = vld [vmem:[%s0] sm:$0xf]
    %v31 = vld [vmem:[#allocation2] sm:$0xf]
    %v32 = vld [vmem:[#allocation2 + $0x4] sm:$0xf]
    %v33 = vld [vmem:[#allocation2 + $0x8] sm:$0xf]
    %v34 = vld [vmem:[#allocation2 + $0xc] sm:$0xf]
    %v35 = vld [vmem:[#allocation2 + $0x10] sm:$0xf]
    %v36 = vld [vmem:[#allocation2 + $0x14] sm:$0xf]
    %v37 = vld [vmem:[#allocation2 + $0x18] sm:$0xf]
    %v38 = vld [vmem:[#allocation2 + $0x1c] sm:$0xf]
    %v39 = vld [vmem:[#allocation2 + $0x20] sm:$0xf]
    %v40 = vld [vmem:[#allocation2 + $0x24] sm:$0xf]
    %v41 = vld [vmem:[#allocation2 + $0x28] sm:$0xf]
    %v42 = vld [vmem:[#allocation2 + $0x2c] sm:$0xf]
    %v43 = vld [vmem:[#allocation2 + $0x30] sm:$0xf]
    %v44 = vld [vmem:[#allocation2 + $0x34] sm:$0xf]
    %v45 = vld [vmem:[#allocation2 + $0x38] sm:$0xf]
    %v46 = vld [vmem:[#allocation2 + $0x3c] sm:$0xf]
    %v63 = vunpack.c.l.b16 %v31
    %v64 = vunpack.c.l.b16 %v32
    %v65 = vunpack.c.l.b16 %v33
    %v66 = vunpack.c.l.b16 %v34
    %v67 = vunpack.c.l.b16 %v35
    %v68 = vunpack.c.l.b16 %v36
    %v69 = vunpack.c.l.b16 %v37
    %v70 = vunpack.c.l.b16 %v38
    %v71 = vunpack.c.l.b16 %v39
    %v72 = vunpack.c.l.b16 %v40
    %v73 = vunpack.c.l.b16 %v41
    %v74 = vunpack.c.l.b16 %v42
    %v75 = vunpack.c.l.b16 %v43
    %v76 = vunpack.c.l.b16 %v44
    %v77 = vunpack.c.l.b16 %v45
    %v78 = vunpack.c.l.b16 %v46
    %v79 = vpack.c.b16 %v64, %v63
    %v80 = vpack.c.b16 %v66, %v65
    %v81 = vpack.c.b16 %v68, %v67
    %v82 = vpack.c.b16 %v70, %v69
    %v83 = vpack.c.b16 %v72, %v71
    %v84 = vpack.c.b16 %v74, %v73
    %v85 = vpack.c.b16 %v76, %v75
    %v86 = vpack.c.b16 %v78, %v77
    %95 = vmatprep.subr.bf16.mxu0 0
    %96 = vmatpush1.bf16.msra.mxu0 %v79
    %97 = vmatprep.subr.bf16.mxu0 0
    %98 = vmatpush1.bf16.msra.mxu0 %v80
    %99 = vmatprep.subr.bf16.mxu0 0
    %100 = vmatpush1.bf16.msra.mxu0 %v81
    %101 = vmatprep.subr.bf16.mxu0 0
    %102 = vmatpush1.bf16.msra.mxu0 %v82
    %103 = vmatprep.subr.bf16.mxu0 0
    %104 = vmatpush1.bf16.msra.mxu0 %v83
    %105 = vmatprep.subr.bf16.mxu0 0
    %106 = vmatpush1.bf16.msra.mxu0 %v84
    %107 = vmatprep.subr.bf16.mxu0 0
    %108 = vmatpush1.bf16.msra.mxu0 %v85
    %109 = vmatprep.subr.bf16.mxu0 0
    %110 = vmatpush1.bf16.msra.mxu0 %v86
    %111 = vmatprep.subr.bf16.mxu0 0
    %112 = vmatpush1.bf16.msra.mxu0 0
    %113 = vmatprep.subr.bf16.mxu0 0
    %114 = vmatpush1.bf16.msra.mxu0 0
    %115 = vmatprep.subr.bf16.mxu0 0
    %116 = vmatpush1.bf16.msra.mxu0 0
    %117 = vmatprep.subr.bf16.mxu0 0
    %118 = vmatpush1.bf16.msra.mxu0 0
    %119 = vmatprep.subr.bf16.mxu0 0
    %120 = vmatpush1.bf16.msra.mxu0 0
    %121 = vmatprep.subr.bf16.mxu0 0
    %122 = vmatpush1.bf16.msra.mxu0 0
    %123 = vmatprep.subr.bf16.mxu0 0
    %124 = vmatpush1.bf16.msra.mxu0 0
    %125 = vmatprep.subr.bf16.mxu0 0
    %126 = vmatpush1.bf16.msra.mxu0 0
    %127 = vmatprep.mubr.bf16.mxu0 0
    %128 = vmatmul.mubr.bf16.gmra.mrb[0].mxu0 %v30
    %v129 = vpop.f32.mrb[0].mxu0
    %v130 = vadd.f32 0.0, %v129
    %v131 = vpop.f32.mrb[0].mxu0
    %v132 = vpop.f32.mrb[0].mxu0
    %v133 = vpop.f32.mrb[0].mxu0
    %134 = vdwg.mxu0
    %v135 = vmax.f32 %v130, -0.9999999
    %v136 = vmin.f32 %v135, 0.9999999
    %v137 = vmul.f32 %v136, %v136
    %v138 = vsub.f32 1.0, %v137
    %v139 = vrsqrt.pop %v138
    %v140 = vmul.f32 %v138, %v139
    %vm141 = vcmp.eq.f32.partialorder %v138, inf
    %v142 = vsel %vm141, %v138, %v140
    %vm143 = vcmp.eq.f32.partialorder %v138, 0.0
    %v144 = vand.u32 %v138, 2147483648
    %v145 = vsel %vm143, %v144, %v142
    %v146 = vmul.f32 %v136, 0.87758255
    %v147 = vmul.f32 %v145, 0.47942555
    %v148 = vsub.f32 %v146, %v147
    %vm149 = vcmp.gt.f32.partialorder %v136, -0.87758255
    %v150 = vsub.f32 %v136, 0.23971277
    %v151 = vsel %vm149, %v148, %v150
    %v152 = vld [vmem:[%s2] sm:$0xff]
    %s153 = smul.u32 0, 128
    %v154 = vstv %s153
    %v155 = vsub.s32 %v152, %v154
    %v156 = vlaneseq
    %v157 = vand.u32 %v156, 127
    %158 = vset.pattern.permute.xlu0 0
    %159 = vperm.xlu0 %158, %v155
    %v160 = vpop.permute.xlu0 %159
    %vm161 = vcmp.eq.s32.totalorder %v157, %v160
    %v162 = vsel %vm161, %v151, %v136
    %v163 = vmul.f32 %v162, 64.0
    %164 = vst [vmem:[#allocation5] sm:$0xff] %v163
    // Predicated region
    $region18: #{tpu_custom_call.1} parent=1 // pred_check
      _
    $region19: #{tpu_custom_call.1} parent=1 // pred_check_branch
      %166 = sbr.rel (0) target = $region21
    $region20: #{tpu_custom_call.1} parent=1 // pred_region
      %s168 = ssub.s32 128, 128
      %169 = vsyncadd [#allocation4], %s168
      %s171 = sshll.u32 [#allocation5], 4
      %s172 = int_to_ptr.vmem [resolvable:$true] %s171
      %174 = dma.vmem_to_hbm [thread:$0]  %s172, 128, %s3, [#allocation4]
    $region21: #{tpu_custom_call.1} parent=1 // pred_fallthru
      _
    // Predicated region
    $region22: #{tpu_custom_call.1} parent=1 // pred_check
      _
    $region23: #{tpu_custom_call.1} parent=1 // pred_check_branch
      %176 = sbr.rel (0) target = $region25
    $region24: #{tpu_custom_call.1} parent=1 // pred_region
      %177 = dma.done [#allocation4], 128
    $region25: #{tpu_custom_call.1} parent=1 // pred_fallthru
      _
    %178 = vsyncpa [#allocation3], 1
    %179 = vsyncpa [#allocation4], 1

</llo_original>
